<compile_context>
chip_gen: v5e
topology: v5e:2x2
jax: 0.10.0
libtpu: 0.0.40
codegen_flags: <defaults>
</compile_context>

<pallas_src>
import jax
import jax.numpy as jnp
import numpy as np
from jax.experimental import pallas as pl
from jax.experimental.pallas import tpu as pltpu


# ----------------------------------------------------------------------------
# Pallas kernel: one (batch, row-tile) per grid step.
#   x_ref  : (1, 1, tile_h + 2, W + 2, Cin)  f32   padded/halo'd input rows
#   wk_ref : (3, 3*Cin, Cout)                bf16  conv weights, column taps
#                                                  folded into K
#   o_ref  : (1, 1, tile_h, W, Cout)         f32   conv output rows
# ----------------------------------------------------------------------------
def _downsample_conv_kernel(x_ref, wk_ref, o_ref):
    th   = o_ref.shape[2]
    w    = o_ref.shape[3]
    cout = o_ref.shape[4]
    k    = wk_ref.shape[1]          # 3 * Cin

    x = x_ref[0, 0]                 # (th+2, W+2, Cin) f32

    # Fold the three column taps into the contraction dim: (th+2, W, 3*Cin).
    # Slicing stays in f32 (robust lowering); a single bf16 cast follows.
    cat = jnp.concatenate(
        [x[:, 0:w, :], x[:, 1:w + 1, :], x[:, 2:w + 2, :]], axis=-1)
    cat = cat.astype(jnp.bfloat16)  # native MXU rate, f32 accumulation below

    # Static unroll over the three row taps; seed acc with the first matmul.
    acc = jnp.dot(cat[0:th].reshape(th * w, k), wk_ref[0],
                  preferred_element_type=jnp.float32)
    for i in range(1, 3):
        lhs = cat[i:i + th].reshape(th * w, k)          # (th*W, 3*Cin) bf16
        acc = acc + jnp.dot(lhs, wk_ref[i],
                            preferred_element_type=jnp.float32)
    o_ref[0, 0] = acc.reshape(th, w, cout)


def _pick_tile_h(H, W, Cin, Cout, vmem_budget_bytes=12 << 20):
    """Largest even divisor of H whose double-buffered tiles fit the budget."""
    for cand in (256, 128, 64, 32, 16, 8, 4, 2):
        if H % cand != 0 or cand % 2 != 0:
            continue
        in_bytes = (cand + 2) * (W + 2) * Cin * 4
        out_bytes = cand * W * Cout * 4
        if 2 * (in_bytes + out_bytes) <= vmem_budget_bytes:   # double-buffered
            return cand
    return 2


# ----------------------------------------------------------------------------
# Wrapper: NCHW f32 in, NCHW f32 out (PyTorch Downsample semantics).
#   w_conv : PyTorch layout (Cout, Cin, 3, 3), Cout = n_feat // 2, no bias.
# ----------------------------------------------------------------------------
def downsample_pallas(x_nchw, w_conv, *, tile_h=None):
    B, Cin, H, W = x_nchw.shape
    Cout = w_conv.shape[0]
    assert H % 2 == 0 and W % 2 == 0, "PixelUnshuffle(2) needs even H, W"

    if tile_h is None:
        tile_h = _pick_tile_h(H, W, Cin, Cout)
    assert H % tile_h == 0 and tile_h % 2 == 0
    T = H // tile_h

    # NCHW -> NHWC, zero-pad spatially by 1 (conv padding=1).
    x_nhwc = jnp.transpose(x_nchw, (0, 2, 3, 1)).astype(jnp.float32)
    x_pad = jnp.pad(x_nhwc, ((0, 0), (1, 1), (1, 1), (0, 0)))

    # Materialise halo'd row tiles: (B, T, tile_h+2, W+2, Cin).
    rows = jnp.arange(T)[:, None] * tile_h + jnp.arange(tile_h + 2)[None, :]
    x_tiles = x_pad[:, rows]

    # Weights: (Cout, Cin, 3, 3) -> wk[i, j*Cin + ci, co] = w[co, ci, i, j].
    wk = jnp.transpose(w_conv, (2, 3, 1, 0)).reshape(3, 3 * Cin, Cout)
    wk = wk.astype(jnp.bfloat16)

    conv = pl.pallas_call(
        _downsample_conv_kernel,
        out_shape=jax.ShapeDtypeStruct((B, T, tile_h, W, Cout), jnp.float32),
        grid_spec=pltpu.PrefetchScalarGridSpec(
            num_scalar_prefetch=0,
            grid=(B, T),
            in_specs=[
                pl.BlockSpec((1, 1, tile_h + 2, W + 2, Cin),
                             lambda b, t: (b, t, 0, 0, 0)),
                pl.BlockSpec((3, 3 * Cin, Cout),
                             lambda b, t: (0, 0, 0)),
            ],
            out_specs=pl.BlockSpec((1, 1, tile_h, W, Cout),
                                   lambda b, t: (b, t, 0, 0, 0)),
        ),
        compiler_params=pltpu.CompilerParams(
            dimension_semantics=("parallel", "parallel")),
    )(x_tiles, wk)

    # PixelUnshuffle(2) + NHWC -> NCHW as one fused XLA transpose.
    y = conv.reshape(B, H, W, Cout)
    y = y.reshape(B, H // 2, 2, W // 2, 2, Cout)
    y = jnp.transpose(y, (0, 5, 2, 4, 1, 3))          # (B, Cout, 2, 2, H/2, W/2)
    return y.reshape(B, Cout * 4, H // 2, W // 2)     # channel = c*4 + 2*i + j


# ----------------------------------------------------------------------------
# Pure-JAX reference matching PyTorch semantics (f32, HIGHEST precision conv).
# ----------------------------------------------------------------------------
def reference(x_nchw, w_conv):
    y = jax.lax.conv_general_dilated(
        x_nchw, w_conv, (1, 1), 'SAME',
        dimension_numbers=('NCHW', 'OIHW', 'NCHW'),
        precision=jax.lax.Precision.HIGHEST)
    B, C, H, W = y.shape
    y = y.reshape(B, C, H // 2, 2, W // 2, 2)
    y = jnp.transpose(y, (0, 1, 3, 5, 2, 4))          # (B, C, i, j, H/2, W/2)
    return y.reshape(B, C * 4, H // 2, W // 2)


if __name__ == "__main__":
    B, n_feat, H, W = 2, 4, 16, 16

    key = jax.random.PRNGKey(0)
    kx, kw = jax.random.split(key)
    x = jax.random.normal(kx, (B, n_feat, H, W), jnp.float32)          # NCHW
    w_conv = 0.1 * jax.random.normal(kw, (n_feat // 2, n_feat, 3, 3),
                                     jnp.float32)                      # OIHW, no bias

    out = downsample_pallas(x, w_conv, tile_h=8)   # 2 row tiles -> exercises the grid
    out = jax.block_until_ready(out)

    ref = reference(x, w_conv)
    assert out.shape == (B, 2 * n_feat, H // 2, W // 2)
    # Kernel intentionally uses bf16 MXU operands (f32 accumulation), so compare
    # against the f32 reference with a tolerance comfortably above bf16 rounding.
    np.testing.assert_allclose(np.asarray(out), np.asarray(ref),
                               rtol=1e-2, atol=1e-2)
    print("KERNEL_OK")
</pallas_src>

<mosaic_0001>
module attributes {stable_mosaic.version = 11 : i64} {
  func.func @_downsample_conv_kernel(%arg0: i32, %arg1: i32, %arg2: memref<1x1x10x18x4xf32, #tpu.memory_space<vmem>>, %arg3: memref<3x12x2xbf16, #tpu.memory_space<vmem>>, %arg4: memref<1x1x8x16x2xf32, #tpu.memory_space<vmem>>) attributes {dimension_semantics = [#tpu.dimension_semantics<parallel>, #tpu.dimension_semantics<parallel>], iteration_bounds = array<i64: 2, 2>, scalar_prefetch = 0 : i64, scratch_operands = 0 : i64, tpu.core_type = #tpu.core_type<tc>, window_params = [{transform_indices = @transform_0, window_bounds = array<i64: 1, 1, 10, 18, 4>}, {pipeline_mode = #tpu.pipeline_mode<synchronous>, transform_indices = @transform_1, window_bounds = array<i64: 3, 12, 2>}, {transform_indices = @transform_2, window_bounds = array<i64: 1, 1, 8, 16, 2>}]} {
    %c0 = arith.constant 0 : index
    %c0_0 = arith.constant 0 : index
    %c0_1 = arith.constant 0 : index
    %c0_2 = arith.constant 0 : index
    %c0_3 = arith.constant 0 : index
    %0 = vector.load %arg2[%c0, %c0_0, %c0_1, %c0_2, %c0_3] : memref<1x1x10x18x4xf32, #tpu.memory_space<vmem>>, vector<1x1x10x18x4xf32>
    %1 = vector.shape_cast %0 : vector<1x1x10x18x4xf32> to vector<10x18x4xf32>
    %2 = vector.extract_strided_slice %1 {offsets = [0, 0, 0], sizes = [10, 16, 4], strides = [1, 1, 1]} : vector<10x18x4xf32> to vector<10x16x4xf32>
    %3 = vector.extract_strided_slice %1 {offsets = [0, 1, 0], sizes = [10, 16, 4], strides = [1, 1, 1]} : vector<10x18x4xf32> to vector<10x16x4xf32>
    %4 = vector.extract_strided_slice %1 {offsets = [0, 2, 0], sizes = [10, 16, 4], strides = [1, 1, 1]} : vector<10x18x4xf32> to vector<10x16x4xf32>
    %5 = tpu.concatenate %2, %3, %4 in 2 : vector<10x16x4xf32>, vector<10x16x4xf32>, vector<10x16x4xf32> -> vector<10x16x12xf32>
    %6 = arith.truncf %5 : vector<10x16x12xf32> to vector<10x16x12xbf16>
    %7 = vector.extract_strided_slice %6 {offsets = [0, 0, 0], sizes = [8, 16, 12], strides = [1, 1, 1]} : vector<10x16x12xbf16> to vector<8x16x12xbf16>
    %8 = vector.shape_cast %7 : vector<8x16x12xbf16> to vector<128x12xbf16>
    %c0_4 = arith.constant 0 : index
    %c0_5 = arith.constant 0 : index
    %c0_6 = arith.constant 0 : index
    %9 = vector.load %arg3[%c0_4, %c0_5, %c0_6] : memref<3x12x2xbf16, #tpu.memory_space<vmem>>, vector<1x12x2xbf16>
    %10 = vector.shape_cast %9 : vector<1x12x2xbf16> to vector<12x2xbf16>
    %cst = arith.constant dense<0.000000e+00> : vector<128x2xf32>
    %11 = tpu.matmul %8, %10, %cst {dimension_numbers = #tpu.dot_dimension_numbers<[1], [0], [0], [1], [0, 0, 1, 1], [], []>} : vector<128x12xbf16>, vector<12x2xbf16>, vector<128x2xf32> -> vector<128x2xf32>
    %12 = vector.extract_strided_slice %6 {offsets = [1, 0, 0], sizes = [8, 16, 12], strides = [1, 1, 1]} : vector<10x16x12xbf16> to vector<8x16x12xbf16>
    %13 = vector.shape_cast %12 : vector<8x16x12xbf16> to vector<128x12xbf16>
    %c1 = arith.constant 1 : index
    %c0_7 = arith.constant 0 : index
    %c0_8 = arith.constant 0 : index
    %14 = vector.load %arg3[%c1, %c0_7, %c0_8] : memref<3x12x2xbf16, #tpu.memory_space<vmem>>, vector<1x12x2xbf16>
    %15 = vector.shape_cast %14 : vector<1x12x2xbf16> to vector<12x2xbf16>
    %cst_9 = arith.constant dense<0.000000e+00> : vector<128x2xf32>
    %16 = tpu.matmul %13, %15, %cst_9 {dimension_numbers = #tpu.dot_dimension_numbers<[1], [0], [0], [1], [0, 0, 1, 1], [], []>} : vector<128x12xbf16>, vector<12x2xbf16>, vector<128x2xf32> -> vector<128x2xf32>
    %17 = arith.addf %11, %16 : vector<128x2xf32>
    %18 = vector.extract_strided_slice %6 {offsets = [2, 0, 0], sizes = [8, 16, 12], strides = [1, 1, 1]} : vector<10x16x12xbf16> to vector<8x16x12xbf16>
    %19 = vector.shape_cast %18 : vector<8x16x12xbf16> to vector<128x12xbf16>
    %c2 = arith.constant 2 : index
    %c0_10 = arith.constant 0 : index
    %c0_11 = arith.constant 0 : index
    %20 = vector.load %arg3[%c2, %c0_10, %c0_11] : memref<3x12x2xbf16, #tpu.memory_space<vmem>>, vector<1x12x2xbf16>
    %21 = vector.shape_cast %20 : vector<1x12x2xbf16> to vector<12x2xbf16>
    %cst_12 = arith.constant dense<0.000000e+00> : vector<128x2xf32>
    %22 = tpu.matmul %19, %21, %cst_12 {dimension_numbers = #tpu.dot_dimension_numbers<[1], [0], [0], [1], [0, 0, 1, 1], [], []>} : vector<128x12xbf16>, vector<12x2xbf16>, vector<128x2xf32> -> vector<128x2xf32>
    %23 = arith.addf %17, %22 : vector<128x2xf32>
    %24 = vector.shape_cast %23 : vector<128x2xf32> to vector<8x16x2xf32>
    %c0_13 = arith.constant 0 : index
    %c0_14 = arith.constant 0 : index
    %c0_15 = arith.constant 0 : index
    %c0_16 = arith.constant 0 : index
    %c0_17 = arith.constant 0 : index
    %25 = vector.load %arg4[%c0_13, %c0_14, %c0_15, %c0_16, %c0_17] : memref<1x1x8x16x2xf32, #tpu.memory_space<vmem>>, vector<1x1x8x16x2xf32>
    %26 = vector.shape_cast %25 : vector<1x1x8x16x2xf32> to vector<8x16x2xf32>
    %27 = vector.shape_cast %24 : vector<8x16x2xf32> to vector<1x1x8x16x2xf32>
    tpu.vector_store %arg4[%c0_13, %c0_14, %c0_15, %c0_16, %c0_17], %27 {strides = array<i32>} : memref<1x1x8x16x2xf32, #tpu.memory_space<vmem>>, vector<1x1x8x16x2xf32>,
    return
  }
  func.func @transform_0(%arg0: i32, %arg1: i32) -> (i32, i32, i32, i32, i32) {
    %c0_i32 = arith.constant 0 : i32
    %c0_i32_0 = arith.constant 0 : i32
    %c0_i32_1 = arith.constant 0 : i32
    %c0_i32_2 = arith.constant 0 : i32
    return %arg0, %arg1, %c0_i32, %c0_i32_0, %c0_i32_1 : i32, i32, i32, i32, i32
  }
  func.func @transform_1(%arg0: i32, %arg1: i32) -> (i32, i32, i32) {
    %c0_i32 = arith.constant 0 : i32
    %c0_i32_0 = arith.constant 0 : i32
    %c0_i32_1 = arith.constant 0 : i32
    %c0_i32_2 = arith.constant 0 : i32
    return %c0_i32, %c0_i32_0, %c0_i32_1 : i32, i32, i32
  }
  func.func @transform_2(%arg0: i32, %arg1: i32) -> (i32, i32, i32, i32, i32) {
    %c0_i32 = arith.constant 0 : i32
    %c0_i32_0 = arith.constant 0 : i32
    %c0_i32_1 = arith.constant 0 : i32
    %c0_i32_2 = arith.constant 0 : i32
    return %arg0, %arg1, %c0_i32, %c0_i32_0, %c0_i32_1 : i32, i32, i32, i32, i32
  }
}

</mosaic_0001>

<llo_original>
// kernel: tpu_custom_call.1
$region0: #{tpu_custom_call.1}
  #allocation0 [shape = 'u32[]', space=smem, size = 0x4, offset = 0x4, fixed_abs, tag = 'smem constant byte address 0x4 - core index']
  #allocation1 [shape = 'u32[72,128]{1,0:T(1,128)}', space=vmem, size = 0x9000, scoped, tag = 'internal scratch']
  %s0 = inlined_call_operand.vmem [shape: f32[2,2,10,18,4], index: 0, kind: input, shape index: {}]
  %s1 = inlined_call_operand.vmem [shape: bf16[3,12,2], index: 1, kind: input, shape index: {}]
  %s2 = inlined_call_operand.vmem [shape: f32[2,2,8,16,2], index: 2, kind: output, shape index: {}]
  %s3 = sld [smem:[#allocation0]]
  $region41: #{tpu_custom_call.1} parent=0
    _
  %s5 = ssub.s32 1, %s3
  %s6 = scalar_select 0, %s5, %s3
  loop: start=0, step=1, limit=6
  $region2: #{tpu_custom_call.1} parent=0 // loop_pre_header
    _
  $region3: #{tpu_custom_call.1} parent=0 // loop_header
    %s8 = sphi 0, %s12
    %p9 = scmp.ge.s32.totalorder %s8, 6
    %s15 = sphi 0, %s27
    %s16 = sphi 0, %s23
    %s17 = sphi 0, %s15
    %s18 = sphi 0, %s16
    %s19 = sphi 0, %s17
    %s20 = sphi 0, %s18
    %s32 = sphi 0, %s34
    %s35 = sphi 0, %s32
    %s36 = sphi 0, %s35
    %s52 = sphi 0, %s36
    %s56 = sphi 0, %s56
    %s58 = sphi 0, %s56
    %s59 = sphi 0, %s58
    %s73 = sphi 0, %s59
    %s81 = sphi 0, %s83
    %s84 = sphi 0, %s81
    %s85 = sphi 0, %s84
    %s101 = sphi 0, %s85
  $region4: #{tpu_custom_call.1} parent=0 // loop_header_branch
    %11 = sbr.rel (%p9) target = $region8
  $region5: #{tpu_custom_call.1} parent=0 // loop_body
    %s13 = ssub.s32 %s8, 1
    %s14 = ssub.s32 %s8, 2
    %s21 = sadd.s32 1, %s16
    %p22 = scmp.ge.s32.totalorder %s21, 2
    %s23 = scalar_select %p22, 0, %s21
    %s24 = sadd.s32 1, %s15
    %s25 = scalar_select %p22, %s24, %s15
    %p26 = scmp.ge.s32.totalorder %s25, 2
    %s27 = scalar_select %p26, 0, %s25
    %s28 = ssub.s32 %s15, %s27
    %s29 = ssub.s32 %s16, %s23
    %s30 = sor.u32 %s28, %s29
    %p31 = scmp.eq.s32.totalorder %s30, 0
    %s33 = sadd.s32 %s32, 1
    %s34 = scalar_select %p31, %s32, %s33
    %p37 = pneg %p31
    %p38 = scmp.eq.s32.totalorder %s8, 3
    %p39 = por %p37, %p38
    %p40 = scmp.ne.s32.totalorder %s32, %s35
    %p41 = scmp.eq.s32.totalorder %s8, 0
    %p42 = por %p40, %p41
    %p43 = scmp.ne.s32.totalorder %s32, %s35
    %p44 = scmp.eq.s32.totalorder %s13, 3
    %p45 = por %p43, %p44
    %p46 = scmp.ne.s32.totalorder %s35, %s36
    %p47 = scmp.eq.s32.totalorder %s13, 0
    %p48 = por %p46, %p47
    %p49 = scmp.ne.s32.totalorder %s35, %s36
    %p50 = scmp.eq.s32.totalorder %s14, 3
    %p51 = por %p49, %p50
    %p53 = scmp.ne.s32.totalorder %s36, %s52
    %p54 = scmp.eq.s32.totalorder %s14, 0
    %p55 = por %p53, %p54
    %s57 = sadd.s32 %s56, 1
    %p60 = scmp.eq.s32.totalorder %s8, 3
    %p61 = scmp.ne.s32.totalorder %s56, %s58
    %p62 = scmp.eq.s32.totalorder %s8, 0
    %p63 = por %p61, %p62
    %p64 = scmp.ne.s32.totalorder %s56, %s58
    %p65 = scmp.eq.s32.totalorder %s13, 3
    %p66 = por %p64, %p65
    %p67 = scmp.ne.s32.totalorder %s58, %s59
    %p68 = scmp.eq.s32.totalorder %s13, 0
    %p69 = por %p67, %p68
    %p70 = scmp.ne.s32.totalorder %s58, %s59
    %p71 = scmp.eq.s32.totalorder %s14, 3
    %p72 = por %p70, %p71
    %p74 = scmp.ne.s32.totalorder %s59, %s73
    %p75 = scmp.eq.s32.totalorder %s14, 0
    %p76 = por %p74, %p75
    %s77 = ssub.s32 %s15, %s27
    %s78 = ssub.s32 %s16, %s23
    %s79 = sor.u32 %s77, %s78
    %p80 = scmp.eq.s32.totalorder %s79, 0
    %s82 = sadd.s32 %s81, 1
    %s83 = scalar_select %p80, %s81, %s82
    %p86 = pneg %p80
    %p87 = scmp.eq.s32.totalorder %s8, 3
    %p88 = por %p86, %p87
    %p89 = scmp.ne.s32.totalorder %s81, %s84
    %p90 = scmp.eq.s32.totalorder %s8, 0
    %p91 = por %p89, %p90
    %p92 = scmp.ne.s32.totalorder %s81, %s84
    %p93 = scmp.eq.s32.totalorder %s13, 3
    %p94 = por %p92, %p93
    %p95 = scmp.ne.s32.totalorder %s84, %s85
    %p96 = scmp.eq.s32.totalorder %s13, 0
    %p97 = por %p95, %p96
    %p98 = scmp.ne.s32.totalorder %s84, %s85
    %p99 = scmp.eq.s32.totalorder %s14, 3
    %p100 = por %p98, %p99
    %p102 = scmp.ne.s32.totalorder %s85, %s101
    %p103 = scmp.eq.s32.totalorder %s14, 0
    %p104 = por %p102, %p103
    %p105 = scmp.le.s32.totalorder 1, %s8
    %p106 = scmp.lt.s32.totalorder %s8, 5
    %p107 = pnand %p105, %p106
    %p108 = pneg %p107
    // Predicated region
    $region9: #{tpu_custom_call.1} parent=5 // pred_check
      _
    $region10: #{tpu_custom_call.1} parent=5 // pred_check_branch
      %110 = sbr.rel (%p107) target = $region12
    $region11: #{tpu_custom_call.1} parent=5 // pred_region
      %s111 = ssub.s32 %s8, 1
      // Predicated region
      $region13: #{tpu_custom_call.1} parent=11 // pred_check
        %p112 = pneg %p69
      $region14: #{tpu_custom_call.1} parent=11 // pred_check_branch
        %114 = sbr.rel (%p112) target = $region16
      $region15: #{tpu_custom_call.1} parent=11 // pred_region
        _
      $region16: #{tpu_custom_call.1} parent=11 // pred_fallthru
        _
    $region12: #{tpu_custom_call.1} parent=5 // pred_fallthru
      _
    %p115 = scmp.lt.s32.totalorder %s8, 4
    // Predicated region
    $region17: #{tpu_custom_call.1} parent=5 // pred_check
      %p116 = pneg %p115
    $region18: #{tpu_custom_call.1} parent=5 // pred_check_branch
      %118 = sbr.rel (%p116) target = $region20
    $region19: #{tpu_custom_call.1} parent=5 // pred_region
      // Predicated region
      $region21: #{tpu_custom_call.1} parent=19 // pred_check
        %p119 = pneg %p42
      $region22: #{tpu_custom_call.1} parent=19 // pred_check_branch
        %121 = sbr.rel (%p119) target = $region24
      $region23: #{tpu_custom_call.1} parent=19 // pred_region
        %p122 = scmp.lt.s32.totalorder %s15, 1
        %s123 = scalar_select %p122, %s15, 1
        %p124 = scmp.lt.s32.totalorder %s16, 1
        %s125 = scalar_select %p124, %s16, 1
        %s126 = smul.addr %s125, 30
        %s127 = smul.addr %s123, 60
        %s128 = sadd.s32 %s126, %s127
        %s129 = smul.addr %s128, 8
        %s130 = scalar_lea.vmem %s0, %s129
      $region24: #{tpu_custom_call.1} parent=19 // pred_fallthru
        _
    $region20: #{tpu_custom_call.1} parent=5 // pred_fallthru
      _
    %p131 = scmp.le.s32.totalorder 1, %s8
    %p132 = scmp.lt.s32.totalorder %s8, 5
    %p133 = pnand %p131, %p132
    %p134 = pneg %p133
    // Predicated region
    $region25: #{tpu_custom_call.1} parent=5 // pred_check
      _
    $region26: #{tpu_custom_call.1} parent=5 // pred_check_branch
      %136 = sbr.rel (%p133) target = $region28
    $region27: #{tpu_custom_call.1} parent=5 // pred_region
      %s137 = ssub.s32 %s8, 1
      %p138 = scmp.lt.s32.totalorder %s17, 1
      %s139 = scalar_select %p138, %s17, 1
      %p140 = scmp.lt.s32.totalorder %s18, 1
      %s141 = scalar_select %p140, %s18, 1
      %s142 = smul.addr %s141, 30
      %s143 = smul.addr %s139, 60
      %s144 = sadd.s32 %s142, %s143
      %s145 = smul.addr %s144, 8
      %s146 = scalar_lea.vmem %s0, %s145
      %p147 = pneg %p48
      %p148 = pneg %p45
      %p149 = pneg %p69
      %p150 = pneg %p66
      %p151 = pneg %p97
      %p152 = pneg %p94
      %p153 = scmp.lt.s32.totalorder %s17, 1
      %s154 = scalar_select %p153, %s17, 1
      %p155 = scmp.lt.s32.totalorder %s18, 1
      %s156 = scalar_select %p155, %s18, 1
      %s157 = smul.addr %s156, 16
      %s158 = smul.addr %s154, 32
      %s159 = sadd.s32 %s157, %s158
      %s160 = smul.addr %s159, 8
      %s161 = scalar_lea.vmem %s2, %s160
      %p162 = scmp.lt.s32.totalorder %s17, 1
      %s163 = scalar_select %p162, %s17, 1
      %p164 = scmp.lt.s32.totalorder %s18, 1
      %s165 = scalar_select %p164, %s18, 1
      %s166 = smul.addr %s165, 30
      %s167 = smul.addr %s163, 60
      %s168 = sadd.s32 %s166, %s167
      %s169 = smul.addr %s168, 8
      %s170 = scalar_lea.vmem %s0, %s169
      %p171 = scmp.lt.s32.totalorder %s17, 1
      %s172 = scalar_select %p171, %s17, 1
      %p173 = scmp.lt.s32.totalorder %s18, 1
      %s174 = scalar_select %p173, %s18, 1
      %s175 = smul.addr %s174, 16
      %s176 = smul.addr %s172, 32
      %s177 = sadd.s32 %s175, %s176
      %s178 = smul.addr %s177, 8
      %s179 = scalar_lea.vmem %s2, %s178
      %v181 = vld [vmem:[%s170] sm:$0xff]
      %v182 = vld [vmem:[%s170 + $0x8] sm:$0xff]
      %v183 = vld [vmem:[%s170 + $0x10] sm:$0x3]
      %v184 = vld [vmem:[%s170 + $0x18] sm:$0xff]
      %v185 = vld [vmem:[%s170 + $0x20] sm:$0xff]
      %v186 = vld [vmem:[%s170 + $0x28] sm:$0x3]
      %v187 = vld [vmem:[%s170 + $0x30] sm:$0xff]
      %v188 = vld [vmem:[%s170 + $0x38] sm:$0xff]
      %v189 = vld [vmem:[%s170 + $0x40] sm:$0x3]
      %v190 = vld [vmem:[%s170 + $0x48] sm:$0xff]
      %v191 = vld [vmem:[%s170 + $0x50] sm:$0xff]
      %v192 = vld [vmem:[%s170 + $0x58] sm:$0x3]
      %v193 = vld [vmem:[%s170 + $0x60] sm:$0xff]
      %v194 = vld [vmem:[%s170 + $0x68] sm:$0xff]
      %v195 = vld [vmem:[%s170 + $0x70] sm:$0x3]
      %v196 = vld [vmem:[%s170 + $0x78] sm:$0xff]
      %v197 = vld [vmem:[%s170 + $0x80] sm:$0xff]
      %v198 = vld [vmem:[%s170 + $0x88] sm:$0x3]
      %v199 = vld [vmem:[%s170 + $0x90] sm:$0xff]
      %v200 = vld [vmem:[%s170 + $0x98] sm:$0xff]
      %v201 = vld [vmem:[%s170 + $0xa0] sm:$0x3]
      %v202 = vld [vmem:[%s170 + $0xa8] sm:$0xff]
      %v203 = vld [vmem:[%s170 + $0xb0] sm:$0xff]
      %v204 = vld [vmem:[%s170 + $0xb8] sm:$0x3]
      %v205 = vld [vmem:[%s170 + $0xc0] sm:$0xff]
      %v206 = vld [vmem:[%s170 + $0xc8] sm:$0xff]
      %v207 = vld [vmem:[%s170 + $0xd0] sm:$0x3]
      %v208 = vld [vmem:[%s170 + $0xd8] sm:$0xff]
      %v209 = vld [vmem:[%s170 + $0xe0] sm:$0xff]
      %v210 = vld [vmem:[%s170 + $0xe8] sm:$0x3]
      %vm241 = vcmask 1046528
      %v242 = vrot.slane %v181, 1
      %v243 = vrot.slane %v182, 1
      %v244 = vsel %vm241, %v242, %v243
      %v245 = vrot.slane %v183, 1
      %v246 = vsel %vm241, %v243, %v245
      %v247 = vrot.slane %v184, 1
      %v248 = vrot.slane %v185, 1
      %v249 = vsel %vm241, %v247, %v248
      %v250 = vrot.slane %v186, 1
      %v251 = vsel %vm241, %v248, %v250
      %v252 = vrot.slane %v187, 1
      %v253 = vrot.slane %v188, 1
      %v254 = vsel %vm241, %v252, %v253
      %v255 = vrot.slane %v189, 1
      %v256 = vsel %vm241, %v253, %v255
      %v257 = vrot.slane %v190, 1
      %v258 = vrot.slane %v191, 1
      %v259 = vsel %vm241, %v257, %v258
      %v260 = vrot.slane %v192, 1
      %v261 = vsel %vm241, %v258, %v260
      %v262 = vrot.slane %v193, 1
      %v263 = vrot.slane %v194, 1
      %v264 = vsel %vm241, %v262, %v263
      %v265 = vrot.slane %v195, 1
      %v266 = vsel %vm241, %v263, %v265
      %v267 = vrot.slane %v196, 1
      %v268 = vrot.slane %v197, 1
      %v269 = vsel %vm241, %v267, %v268
      %v270 = vrot.slane %v198, 1
      %v271 = vsel %vm241, %v268, %v270
      %v272 = vrot.slane %v199, 1
      %v273 = vrot.slane %v200, 1
      %v274 = vsel %vm241, %v272, %v273
      %v275 = vrot.slane %v201, 1
      %v276 = vsel %vm241, %v273, %v275
      %v277 = vrot.slane %v202, 1
      %v278 = vrot.slane %v203, 1
      %v279 = vsel %vm241, %v277, %v278
      %v280 = vrot.slane %v204, 1
      %v281 = vsel %vm241, %v278, %v280
      %v282 = vrot.slane %v205, 1
      %v283 = vrot.slane %v206, 1
      %v284 = vsel %vm241, %v282, %v283
      %v285 = vrot.slane %v207, 1
      %v286 = vsel %vm241, %v283, %v285
      %v287 = vrot.slane %v208, 1
      %v288 = vrot.slane %v209, 1
      %v289 = vsel %vm241, %v287, %v288
      %v290 = vrot.slane %v210, 1
      %v291 = vsel %vm241, %v288, %v290
      %292 = vrot.lane.b32.xlu0 %v244, 4
      %v293 = vpop.permute.xlu0 %292
      %294 = vrot.lane.b32.xlu0 %v246, 4
      %v295 = vpop.permute.xlu0 %294
      %296 = vrot.lane.b32.xlu0 %v249, 4
      %v297 = vpop.permute.xlu0 %296
      %298 = vrot.lane.b32.xlu0 %v251, 4
      %v299 = vpop.permute.xlu0 %298
      %300 = vrot.lane.b32.xlu0 %v254, 4
      %v301 = vpop.permute.xlu0 %300
      %302 = vrot.lane.b32.xlu0 %v256, 4
      %v303 = vpop.permute.xlu0 %302
      %304 = vrot.lane.b32.xlu0 %v259, 4
      %v305 = vpop.permute.xlu0 %304
      %306 = vrot.lane.b32.xlu0 %v261, 4
      %v307 = vpop.permute.xlu0 %306
      %308 = vrot.lane.b32.xlu0 %v264, 4
      %v309 = vpop.permute.xlu0 %308
      %310 = vrot.lane.b32.xlu0 %v266, 4
      %v311 = vpop.permute.xlu0 %310
      %312 = vrot.lane.b32.xlu0 %v269, 4
      %v313 = vpop.permute.xlu0 %312
      %314 = vrot.lane.b32.xlu0 %v271, 4
      %v315 = vpop.permute.xlu0 %314
      %316 = vrot.lane.b32.xlu0 %v274, 4
      %v317 = vpop.permute.xlu0 %316
      %318 = vrot.lane.b32.xlu0 %v276, 4
      %v319 = vpop.permute.xlu0 %318
      %320 = vrot.lane.b32.xlu0 %v279, 4
      %v321 = vpop.permute.xlu0 %320
      %322 = vrot.lane.b32.xlu0 %v281, 4
      %v323 = vpop.permute.xlu0 %322
      %324 = vrot.lane.b32.xlu0 %v284, 4
      %v325 = vpop.permute.xlu0 %324
      %326 = vrot.lane.b32.xlu0 %v286, 4
      %v327 = vpop.permute.xlu0 %326
      %328 = vrot.lane.b32.xlu0 %v289, 4
      %v329 = vpop.permute.xlu0 %328
      %330 = vrot.lane.b32.xlu0 %v291, 4
      %v331 = vpop.permute.xlu0 %330
      %vm352 = vcmask 1045504
      %v353 = vrot.slane %v181, 2
      %v354 = vrot.slane %v182, 2
      %v355 = vsel %vm352, %v353, %v354
      %v356 = vrot.slane %v183, 2
      %v357 = vsel %vm352, %v354, %v356
      %v358 = vrot.slane %v184, 2
      %v359 = vrot.slane %v185, 2
      %v360 = vsel %vm352, %v358, %v359
      %v361 = vrot.slane %v186, 2
      %v362 = vsel %vm352, %v359, %v361
      %v363 = vrot.slane %v187, 2
      %v364 = vrot.slane %v188, 2
      %v365 = vsel %vm352, %v363, %v364
      %v366 = vrot.slane %v189, 2
      %v367 = vsel %vm352, %v364, %v366
      %v368 = vrot.slane %v190, 2
      %v369 = vrot.slane %v191, 2
      %v370 = vsel %vm352, %v368, %v369
      %v371 = vrot.slane %v192, 2
      %v372 = vsel %vm352, %v369, %v371
      %v373 = vrot.slane %v193, 2
      %v374 = vrot.slane %v194, 2
      %v375 = vsel %vm352, %v373, %v374
      %v376 = vrot.slane %v195, 2
      %v377 = vsel %vm352, %v374, %v376
      %v378 = vrot.slane %v196, 2
      %v379 = vrot.slane %v197, 2
      %v380 = vsel %vm352, %v378, %v379
      %v381 = vrot.slane %v198, 2
      %v382 = vsel %vm352, %v379, %v381
      %v383 = vrot.slane %v199, 2
      %v384 = vrot.slane %v200, 2
      %v385 = vsel %vm352, %v383, %v384
      %v386 = vrot.slane %v201, 2
      %v387 = vsel %vm352, %v384, %v386
      %v388 = vrot.slane %v202, 2
      %v389 = vrot.slane %v203, 2
      %v390 = vsel %vm352, %v388, %v389
      %v391 = vrot.slane %v204, 2
      %v392 = vsel %vm352, %v389, %v391
      %v393 = vrot.slane %v205, 2
      %v394 = vrot.slane %v206, 2
      %v395 = vsel %vm352, %v393, %v394
      %v396 = vrot.slane %v207, 2
      %v397 = vsel %vm352, %v394, %v396
      %v398 = vrot.slane %v208, 2
      %v399 = vrot.slane %v209, 2
      %v400 = vsel %vm352, %v398, %v399
      %v401 = vrot.slane %v210, 2
      %v402 = vsel %vm352, %v399, %v401
      %403 = vrot.lane.b32.xlu0 %v355, 8
      %v404 = vpop.permute.xlu0 %403
      %405 = vrot.lane.b32.xlu0 %v357, 8
      %v406 = vpop.permute.xlu0 %405
      %407 = vrot.lane.b32.xlu0 %v360, 8
      %v408 = vpop.permute.xlu0 %407
      %409 = vrot.lane.b32.xlu0 %v362, 8
      %v410 = vpop.permute.xlu0 %409
      %411 = vrot.lane.b32.xlu0 %v365, 8
      %v412 = vpop.permute.xlu0 %411
      %413 = vrot.lane.b32.xlu0 %v367, 8
      %v414 = vpop.permute.xlu0 %413
      %415 = vrot.lane.b32.xlu0 %v370, 8
      %v416 = vpop.permute.xlu0 %415
      %417 = vrot.lane.b32.xlu0 %v372, 8
      %v418 = vpop.permute.xlu0 %417
      %419 = vrot.lane.b32.xlu0 %v375, 8
      %v420 = vpop.permute.xlu0 %419
      %421 = vrot.lane.b32.xlu0 %v377, 8
      %v422 = vpop.permute.xlu0 %421
      %423 = vrot.lane.b32.xlu0 %v380, 8
      %v424 = vpop.permute.xlu0 %423
      %425 = vrot.lane.b32.xlu0 %v382, 8
      %v426 = vpop.permute.xlu0 %425
      %427 = vrot.lane.b32.xlu0 %v385, 8
      %v428 = vpop.permute.xlu0 %427
      %429 = vrot.lane.b32.xlu0 %v387, 8
      %v430 = vpop.permute.xlu0 %429
      %431 = vrot.lane.b32.xlu0 %v390, 8
      %v432 = vpop.permute.xlu0 %431
      %433 = vrot.lane.b32.xlu0 %v392, 8
      %v434 = vpop.permute.xlu0 %433
      %435 = vrot.lane.b32.xlu0 %v395, 8
      %v436 = vpop.permute.xlu0 %435
      %437 = vrot.lane.b32.xlu0 %v397, 8
      %v438 = vpop.permute.xlu0 %437
      %439 = vrot.lane.b32.xlu0 %v400, 8
      %v440 = vpop.permute.xlu0 %439
      %441 = vrot.lane.b32.xlu0 %v402, 8
      %v442 = vpop.permute.xlu0 %441
      %vm463 = vcmask 31744
      %v464 = vsel %vm463, %v181, %v293
      %v465 = vsel %vm463, %v182, %v295
      %v466 = vsel %vm463, %v184, %v297
      %v467 = vsel %vm463, %v185, %v299
      %v468 = vsel %vm463, %v187, %v301
      %v469 = vsel %vm463, %v188, %v303
      %v470 = vsel %vm463, %v190, %v305
      %v471 = vsel %vm463, %v191, %v307
      %v472 = vsel %vm463, %v193, %v309
      %v473 = vsel %vm463, %v194, %v311
      %v474 = vsel %vm463, %v196, %v313
      %v475 = vsel %vm463, %v197, %v315
      %v476 = vsel %vm463, %v199, %v317
      %v477 = vsel %vm463, %v200, %v319
      %v478 = vsel %vm463, %v202, %v321
      %v479 = vsel %vm463, %v203, %v323
      %v480 = vsel %vm463, %v205, %v325
      %v481 = vsel %vm463, %v206, %v327
      %v482 = vsel %vm463, %v208, %v329
      %v483 = vsel %vm463, %v209, %v331
      %vm484 = vcmask 64512
      %v485 = vsel %vm484, %v464, %v404
      %v486 = vsel %vm484, %v465, %v406
      %v487 = vsel %vm484, %v466, %v408
      %v488 = vsel %vm484, %v467, %v410
      %v489 = vsel %vm484, %v468, %v412
      %v490 = vsel %vm484, %v469, %v414
      %v491 = vsel %vm484, %v470, %v416
      %v492 = vsel %vm484, %v471, %v418
      %v493 = vsel %vm484, %v472, %v420
      %v494 = vsel %vm484, %v473, %v422
      %v495 = vsel %vm484, %v474, %v424
      %v496 = vsel %vm484, %v475, %v426
      %v497 = vsel %vm484, %v476, %v428
      %v498 = vsel %vm484, %v477, %v430
      %v499 = vsel %vm484, %v478, %v432
      %v500 = vsel %vm484, %v479, %v434
      %v501 = vsel %vm484, %v480, %v436
      %v502 = vsel %vm484, %v481, %v438
      %v503 = vsel %vm484, %v482, %v440
      %v504 = vsel %vm484, %v483, %v442
      %v505 = vpack.c.bf16 %v485, %v485
      %v506 = vpack.c.bf16 %v486, %v486
      %v507 = vpack.c.bf16 %v487, %v487
      %v508 = vpack.c.bf16 %v488, %v488
      %v509 = vpack.c.bf16 %v489, %v489
      %v510 = vpack.c.bf16 %v490, %v490
      %v511 = vpack.c.bf16 %v491, %v491
      %v512 = vpack.c.bf16 %v492, %v492
      %v513 = vpack.c.bf16 %v493, %v493
      %v514 = vpack.c.bf16 %v494, %v494
      %v515 = vpack.c.bf16 %v495, %v495
      %v516 = vpack.c.bf16 %v496, %v496
      %v517 = vpack.c.bf16 %v497, %v497
      %v518 = vpack.c.bf16 %v498, %v498
      %v519 = vpack.c.bf16 %v499, %v499
      %v520 = vpack.c.bf16 %v500, %v500
      %v521 = vpack.c.bf16 %v501, %v501
      %v522 = vpack.c.bf16 %v502, %v502
      %v523 = vpack.c.bf16 %v503, %v503
      %v524 = vpack.c.bf16 %v504, %v504
      %v525 = vld [vmem:[%s1] sm:$0xf]
      %v526 = vld [vmem:[%s1 + $0x4] sm:$0x3]
      %s527 = scalar_lea.vmem %s1, 8
      %v528 = vld [vmem:[%s527] sm:$0xf]
      %v529 = vld [vmem:[%s527 + $0x4] sm:$0x3]
      %v546 = vunpack.c.l.b16 %v507
      %v547 = vunpack.c.l.b16 %v508
      %v548 = vunpack.c.l.b16 %v509
      %v549 = vunpack.c.l.b16 %v510
      %v550 = vunpack.c.l.b16 %v511
      %v551 = vunpack.c.l.b16 %v512
      %v552 = vunpack.c.l.b16 %v513
      %v553 = vunpack.c.l.b16 %v514
      %v554 = vunpack.c.l.b16 %v515
      %v555 = vunpack.c.l.b16 %v516
      %v556 = vunpack.c.l.b16 %v517
      %v557 = vunpack.c.l.b16 %v518
      %v558 = vunpack.c.l.b16 %v519
      %v559 = vunpack.c.l.b16 %v520
      %v560 = vunpack.c.l.b16 %v521
      %v561 = vunpack.c.l.b16 %v522
      %v562 = vpack.c.b16 %v547, %v546
      %v563 = vpack.c.b16 %v549, %v548
      %v564 = vpack.c.b16 %v551, %v550
      %v565 = vpack.c.b16 %v553, %v552
      %v566 = vpack.c.b16 %v555, %v554
      %v567 = vpack.c.b16 %v557, %v556
      %v568 = vpack.c.b16 %v559, %v558
      %v569 = vpack.c.b16 %v561, %v560
      %v572 = vunpack.c.l.b16 %v528
      %v573 = vunpack.c.l.b16 %v529
      %v574 = vpack.c.b16 %v573, %v572
      %vm575 = vcmask 97280
      %v577 = vsel %vm575, %v562, 0
      %v580 = vsel %vm575, %v563, 0
      %v583 = vsel %vm575, %v564, 0
      %v586 = vsel %vm575, %v565, 0
      %v589 = vsel %vm575, %v566, 0
      %v592 = vsel %vm575, %v567, 0
      %v595 = vsel %vm575, %v568, 0
      %v598 = vsel %vm575, %v569, 0
      %v601 = vsel %vm352, %v574, 0
      %603 = vmatpush.bf16.msra.mxu0 0
      %604 = vmatpush.bf16.msra.mxu0 0
      %605 = vmatpush.bf16.msra.mxu0 0
      %606 = vmatpush.bf16.msra.mxu0 0
      %607 = vmatpush.bf16.msra.mxu0 0
      %608 = vmatpush.bf16.msra.mxu0 0
      %609 = vmatpush.bf16.msra.mxu0 0
      %610 = vmatpush.bf16.msra.mxu0 %v601
      %611 = vmatmul.bf16.gmra.mxu0 %v577
      %v612 = vpop.f32.mrf.mxu0
      %v613 = vadd.f32 0.0, %v612
      %v614 = vpop.f32.mrf.mxu0
      %v615 = vadd.f32 0.0, %v614
      %616 = vmatmul.bf16.gmra.mxu0 %v580
      %v617 = vpop.f32.mrf.mxu0
      %v618 = vadd.f32 0.0, %v617
      %v619 = vpop.f32.mrf.mxu0
      %v620 = vadd.f32 0.0, %v619
      %621 = vmatmul.bf16.gmra.mxu0 %v583
      %v622 = vpop.f32.mrf.mxu0
      %v623 = vadd.f32 0.0, %v622
      %v624 = vpop.f32.mrf.mxu0
      %v625 = vadd.f32 0.0, %v624
      %626 = vmatmul.bf16.gmra.mxu0 %v586
      %v627 = vpop.f32.mrf.mxu0
      %v628 = vadd.f32 0.0, %v627
      %v629 = vpop.f32.mrf.mxu0
      %v630 = vadd.f32 0.0, %v629
      %631 = vmatmul.bf16.gmra.mxu0 %v589
      %v632 = vpop.f32.mrf.mxu0
      %v633 = vadd.f32 0.0, %v632
      %v634 = vpop.f32.mrf.mxu0
      %v635 = vadd.f32 0.0, %v634
      %636 = vmatmul.bf16.gmra.mxu0 %v592
      %v637 = vpop.f32.mrf.mxu0
      %v638 = vadd.f32 0.0, %v637
      %v639 = vpop.f32.mrf.mxu0
      %v640 = vadd.f32 0.0, %v639
      %641 = vmatmul.bf16.gmra.mxu0 %v595
      %v642 = vpop.f32.mrf.mxu0
      %v643 = vadd.f32 0.0, %v642
      %v644 = vpop.f32.mrf.mxu0
      %v645 = vadd.f32 0.0, %v644
      %646 = vmatmul.bf16.gmra.mxu0 %v598
      %v647 = vpop.f32.mrf.mxu0
      %v648 = vadd.f32 0.0, %v647
      %v649 = vpop.f32.mrf.mxu0
      %v650 = vadd.f32 0.0, %v649
      %651 = vdwg.mxu0
      %v654 = vunpack.c.l.b16 %v505
      %v655 = vunpack.c.l.b16 %v506
      %v656 = vpack.c.b16 %v655, %v654
      %v659 = vunpack.c.l.b16 %v525
      %v660 = vunpack.c.l.b16 %v526
      %v661 = vpack.c.b16 %v660, %v659
      %v663 = vsel %vm575, %v656, 0
      %v666 = vsel %vm352, %v661, 0
      %668 = vmatpush.bf16.msra.mxu0 0
      %669 = vmatpush.bf16.msra.mxu0 0
      %670 = vmatpush.bf16.msra.mxu0 0
      %671 = vmatpush.bf16.msra.mxu0 0
      %672 = vmatpush.bf16.msra.mxu0 0
      %673 = vmatpush.bf16.msra.mxu0 0
      %674 = vmatpush.bf16.msra.mxu0 0
      %675 = vmatpush.bf16.msra.mxu0 %v666
      %676 = vmatmul.bf16.gmra.mxu0 %v663
      %v677 = vpop.f32.mrf.mxu0
      %v678 = vadd.f32 %v613, %v677
      %v679 = vpop.f32.mrf.mxu0
      %v680 = vadd.f32 %v615, %v679
      %681 = vmatmul.bf16.gmra.mxu0 %v577
      %v682 = vpop.f32.mrf.mxu0
      %v683 = vadd.f32 %v618, %v682
      %v684 = vpop.f32.mrf.mxu0
      %v685 = vadd.f32 %v620, %v684
      %686 = vmatmul.bf16.gmra.mxu0 %v580
      %v687 = vpop.f32.mrf.mxu0
      %v688 = vadd.f32 %v623, %v687
      %v689 = vpop.f32.mrf.mxu0
      %v690 = vadd.f32 %v625, %v689
      %691 = vmatmul.bf16.gmra.mxu0 %v583
      %v692 = vpop.f32.mrf.mxu0
      %v693 = vadd.f32 %v628, %v692
      %v694 = vpop.f32.mrf.mxu0
      %v695 = vadd.f32 %v630, %v694
      %696 = vmatmul.bf16.gmra.mxu0 %v586
      %v697 = vpop.f32.mrf.mxu0
      %v698 = vadd.f32 %v633, %v697
      %v699 = vpop.f32.mrf.mxu0
      %v700 = vadd.f32 %v635, %v699
      %701 = vmatmul.bf16.gmra.mxu0 %v589
      %v702 = vpop.f32.mrf.mxu0
      %v703 = vadd.f32 %v638, %v702
      %v704 = vpop.f32.mrf.mxu0
      %v705 = vadd.f32 %v640, %v704
      %706 = vmatmul.bf16.gmra.mxu0 %v592
      %v707 = vpop.f32.mrf.mxu0
      %v708 = vadd.f32 %v643, %v707
      %v709 = vpop.f32.mrf.mxu0
      %v710 = vadd.f32 %v645, %v709
      %711 = vmatmul.bf16.gmra.mxu0 %v595
      %v712 = vpop.f32.mrf.mxu0
      %v713 = vadd.f32 %v648, %v712
      %v714 = vpop.f32.mrf.mxu0
      %v715 = vadd.f32 %v650, %v714
      %716 = vdwg.mxu0
      %s717 = scalar_lea.vmem %s1, 16
      %v718 = vld [vmem:[%s717] sm:$0xf]
      %v719 = vld [vmem:[%s717 + $0x4] sm:$0x3]
      %v722 = vunpack.c.l.b16 %v523
      %v723 = vunpack.c.l.b16 %v524
      %v724 = vpack.c.b16 %v723, %v722
      %v727 = vunpack.c.l.b16 %v718
      %v728 = vunpack.c.l.b16 %v719
      %v729 = vpack.c.b16 %v728, %v727
      %v731 = vsel %vm575, %v724, 0
      %v734 = vsel %vm352, %v729, 0
      %736 = vmatpush.bf16.msra.mxu0 0
      %737 = vmatpush.bf16.msra.mxu0 0
      %738 = vmatpush.bf16.msra.mxu0 0
      %739 = vmatpush.bf16.msra.mxu0 0
      %740 = vmatpush.bf16.msra.mxu0 0
      %741 = vmatpush.bf16.msra.mxu0 0
      %742 = vmatpush.bf16.msra.mxu0 0
      %743 = vmatpush.bf16.msra.mxu0 %v734
      %744 = vmatmul.bf16.gmra.mxu0 %v580
      %v745 = vpop.f32.mrf.mxu0
      %v746 = vadd.f32 0.0, %v745
      %v747 = vpop.f32.mrf.mxu0
      %v748 = vadd.f32 0.0, %v747
      %749 = vmatmul.bf16.gmra.mxu0 %v583
      %v750 = vpop.f32.mrf.mxu0
      %v751 = vadd.f32 0.0, %v750
      %v752 = vpop.f32.mrf.mxu0
      %v753 = vadd.f32 0.0, %v752
      %754 = vmatmul.bf16.gmra.mxu0 %v586
      %v755 = vpop.f32.mrf.mxu0
      %v756 = vadd.f32 0.0, %v755
      %v757 = vpop.f32.mrf.mxu0
      %v758 = vadd.f32 0.0, %v757
      %759 = vmatmul.bf16.gmra.mxu0 %v589
      %v760 = vpop.f32.mrf.mxu0
      %v761 = vadd.f32 0.0, %v760
      %v762 = vpop.f32.mrf.mxu0
      %v763 = vadd.f32 0.0, %v762
      %764 = vmatmul.bf16.gmra.mxu0 %v592
      %v765 = vpop.f32.mrf.mxu0
      %v766 = vadd.f32 0.0, %v765
      %v767 = vpop.f32.mrf.mxu0
      %v768 = vadd.f32 0.0, %v767
      %769 = vmatmul.bf16.gmra.mxu0 %v595
      %v770 = vpop.f32.mrf.mxu0
      %v771 = vadd.f32 0.0, %v770
      %v772 = vpop.f32.mrf.mxu0
      %v773 = vadd.f32 0.0, %v772
      %774 = vmatmul.bf16.gmra.mxu0 %v598
      %v775 = vpop.f32.mrf.mxu0
      %v776 = vadd.f32 0.0, %v775
      %v777 = vpop.f32.mrf.mxu0
      %v778 = vadd.f32 0.0, %v777
      %779 = vmatmul.bf16.gmra.mxu0 %v731
      %v780 = vpop.f32.mrf.mxu0
      %v781 = vadd.f32 0.0, %v780
      %v782 = vpop.f32.mrf.mxu0
      %v783 = vadd.f32 0.0, %v782
      %784 = vdwg.mxu0
      %v785 = vadd.f32 %v678, %v746
      %v786 = vadd.f32 %v680, %v748
      %v787 = vadd.f32 %v683, %v751
      %v788 = vadd.f32 %v685, %v753
      %v789 = vadd.f32 %v688, %v756
      %v790 = vadd.f32 %v690, %v758
      %v791 = vadd.f32 %v693, %v761
      %v792 = vadd.f32 %v695, %v763
      %v793 = vadd.f32 %v698, %v766
      %v794 = vadd.f32 %v700, %v768
      %v795 = vadd.f32 %v703, %v771
      %v796 = vadd.f32 %v705, %v773
      %v797 = vadd.f32 %v708, %v776
      %v798 = vadd.f32 %v710, %v778
      %v799 = vadd.f32 %v713, %v781
      %v800 = vadd.f32 %v715, %v783
      %vm801 = vcmask 15360
      %802 = vst.msk [vmem:[%s179] sm:$0xff] %vm801, %v785
      %803 = vst.msk [vmem:[%s179 + $0x8] sm:$0xff] %vm801, %v786
      %804 = vst.msk [vmem:[%s179 + $0x10] sm:$0xff] %vm801, %v787
      %805 = vst.msk [vmem:[%s179 + $0x18] sm:$0xff] %vm801, %v788
      %806 = vst.msk [vmem:[%s179 + $0x20] sm:$0xff] %vm801, %v789
      %807 = vst.msk [vmem:[%s179 + $0x28] sm:$0xff] %vm801, %v790
      %808 = vst.msk [vmem:[%s179 + $0x30] sm:$0xff] %vm801, %v791
      %809 = vst.msk [vmem:[%s179 + $0x38] sm:$0xff] %vm801, %v792
      %810 = vst.msk [vmem:[%s179 + $0x40] sm:$0xff] %vm801, %v793
      %811 = vst.msk [vmem:[%s179 + $0x48] sm:$0xff] %vm801, %v794
      %812 = vst.msk [vmem:[%s179 + $0x50] sm:$0xff] %vm801, %v795
      %813 = vst.msk [vmem:[%s179 + $0x58] sm:$0xff] %vm801, %v796
      %814 = vst.msk [vmem:[%s179 + $0x60] sm:$0xff] %vm801, %v797
      %815 = vst.msk [vmem:[%s179 + $0x68] sm:$0xff] %vm801, %v798
      %816 = vst.msk [vmem:[%s179 + $0x70] sm:$0xff] %vm801, %v799
      %817 = vst.msk [vmem:[%s179 + $0x78] sm:$0xff] %vm801, %v800
      %p818 = scmp.lt.s32.totalorder %s17, 1
      %s819 = scalar_select %p818, %s17, 1
      %p820 = scmp.lt.s32.totalorder %s18, 1
      %s821 = scalar_select %p820, %s18, 1
      %s822 = smul.addr %s821, 16
      %s823 = smul.addr %s819, 32
      %s824 = sadd.s32 %s822, %s823
      %s825 = smul.addr %s824, 8
      %s826 = scalar_lea.vmem %s2, %s825
      // Predicated region
      $region29: #{tpu_custom_call.1} parent=27 // pred_check
        %p827 = pneg %p94
      $region30: #{tpu_custom_call.1} parent=27 // pred_check_branch
        %829 = sbr.rel (%p827) target = $region32
      $region31: #{tpu_custom_call.1} parent=27 // pred_region
        _
      $region32: #{tpu_custom_call.1} parent=27 // pred_fallthru
        _
    $region28: #{tpu_custom_call.1} parent=5 // pred_fallthru
      _
    %p830 = scmp.le.s32.totalorder 2, %s8
    // Predicated region
    $region33: #{tpu_custom_call.1} parent=5 // pred_check
      %p831 = pneg %p830
    $region34: #{tpu_custom_call.1} parent=5 // pred_check_branch
      %833 = sbr.rel (%p831) target = $region36
    $region35: #{tpu_custom_call.1} parent=5 // pred_region
      %s834 = ssub.s32 %s8, 2
      // Predicated region
      $region37: #{tpu_custom_call.1} parent=35 // pred_check
        %p835 = pneg %p100
      $region38: #{tpu_custom_call.1} parent=35 // pred_check_branch
        %837 = sbr.rel (%p835) target = $region40
      $region39: #{tpu_custom_call.1} parent=35 // pred_region
        %p838 = scmp.lt.s32.totalorder %s19, 1
        %s839 = scalar_select %p838, %s19, 1
        %p840 = scmp.lt.s32.totalorder %s20, 1
        %s841 = scalar_select %p840, %s20, 1
        %s842 = smul.addr %s841, 16
        %s843 = smul.addr %s839, 32
        %s844 = sadd.s32 %s842, %s843
        %s845 = smul.addr %s844, 8
        %s846 = scalar_lea.vmem %s2, %s845
      $region40: #{tpu_custom_call.1} parent=35 // pred_fallthru
        _
    $region36: #{tpu_custom_call.1} parent=5 // pred_fallthru
      _
  $region6: #{tpu_custom_call.1} parent=0 // loop_footer
    %s12 = sadd.s32 1, %s8
  $region7: #{tpu_custom_call.1} parent=0 // loop_footer_branch
    %7 = sbr.rel target = $region3
  $region8: #{tpu_custom_call.1} parent=0 // loop_exit
    _

</llo_original>
